<compile_context>
chip_gen: v7x
topology: tpu7x:2x2x1
jax: 0.10.0
libtpu: 0.0.40
codegen_flags: <defaults>
</compile_context>

<pallas_src>
from math import sqrt

import numpy as np
import jax
import jax.numpy as jnp
from jax.experimental import pallas as pl
from jax.experimental.pallas import tpu as pltpu


# ----------------------------------------------------------------------------
# Static index table: pad + unfold + torch raw-view, center tap only -> [P, C]
# ----------------------------------------------------------------------------
def _base_view_indices(seq_len, patch_len, stride):
    """idx0[t, c] = position in the padded series (length L+stride) that holds
    x_view[n, c, t], where x_view is torch's raw `.contiguous().view(-1, C, P)`
    reinterpretation of the unfold output (bug-for-bug with the module)."""
    Lp = seq_len + stride
    C = patch_len
    P = (Lp - C) // stride + 1
    f = np.arange(C)[:, None] * P + np.arange(P)[None, :]   # [C, P] flat view index
    p, r = np.divmod(f, C)                                   # back to (patch, offset)
    idx = (p * stride + r).astype(np.int32)                  # [C, P]
    return np.ascontiguousarray(idx.T), P                    # [P, C]


# ----------------------------------------------------------------------------
# Pallas kernel: build +/-1 circular taps in VMEM, fused conv-matmul + bias
# ----------------------------------------------------------------------------
def _make_kernel(P):
    """Kernel over row tiles of the center-tap feature matrix.

    x_ref: [tm, C]   rows ordered (n, t), tm a multiple of P (whole n-groups)
    w_ref: [3C, D]   rows ordered [k=0 | k=1 | k=2] x channel
    b_ref: [1, D]
    o_ref: [tm, D]
    """

    def kernel(x_ref, w_ref, b_ref, o_ref):
        x = x_ref[...]                                           # center tap (k=1)
        if P == 1:
            prev = x
            nxt = x
        else:
            # Whole-block row shifts (cheap slice+concat on the XLU/VPU) ...
            down1 = jnp.concatenate([x[-1:, :], x[:-1, :]], axis=0)          # row i -> x[i-1]
            up1 = jnp.concatenate([x[1:, :], x[:1, :]], axis=0)              # row i -> x[i+1]
            upP = jnp.concatenate([x[P - 1:, :], x[:P - 1, :]], axis=0)      # row i -> x[i+P-1]
            downP = jnp.concatenate([x[-(P - 1):, :], x[:-(P - 1), :]], axis=0)  # row i -> x[i-(P-1)]
            # ... then fix the circular wrap at each P-row group boundary.
            t = jax.lax.broadcasted_iota(jnp.int32, x.shape, 0) % P
            prev = jnp.where(t == 0, upP, down1)       # x_view[., c, (t-1) mod P]  (k=0)
            nxt = jnp.where(t == P - 1, downP, up1)    # x_view[., c, (t+1) mod P]  (k=2)

        feats = jnp.concatenate([prev, x, nxt], axis=-1)         # [tm, 3C]
        acc = jnp.dot(feats, w_ref[...], preferred_element_type=jnp.float32)
        o_ref[...] = (acc + b_ref[...].astype(jnp.float32)).astype(o_ref.dtype)

    return kernel


def _pick_group_tile(N, P, target_rows):
    """Largest group count g with g | N, (g*P) % 8 == 0 (sublane alignment),
    g*P <= target_rows, and (when N > 1) at least 2 grid steps for megacore.
    Falls back to the whole array (block == full dims is always legal)."""
    cap = N if N == 1 else (N + 1) // 2
    start = max(1, min(cap, target_rows // max(P, 1), N))
    for g in range(start, 0, -1):
        if N % g == 0 and (g * P) % 8 == 0:
            return g
    return N


def _conv_matmul(base2, w_mat, b_mat, P, *, grid_steps_hint=None):
    """base2: [M, C] (M = N*P, whole P-row groups), w_mat: [3C, D], b_mat: [1, D]
    -> [M, D].  1-D grid over row tiles; no padding, no post-slice."""
    M, C = base2.shape
    D = w_mat.shape[1]
    N = M // P
    dtype = base2.dtype
    itemsize = jnp.dtype(dtype).itemsize

    # Tile sizing: big enough to amortize per-step overhead, small enough that
    # the double-buffered (lane-padded) in/out tiles stay well under the
    # default scoped-VMEM budget on all generations (v7x: 64 MiB physical).
    in_row = max(C, 128) * itemsize
    out_row = max(D, 128) * itemsize
    target_rows = max(8, min(8192, (8 << 20) // (2 * (in_row + out_row))))
    if grid_steps_hint:
        target_rows = max(8, min(target_rows, M // grid_steps_hint))

    g = _pick_group_tile(N, P, target_rows)
    tm = g * P

    cost = pl.CostEstimate(
        flops=2 * M * (3 * C) * D,
        transcendentals=0,
        bytes_accessed=(M * C + M * D + 3 * C * D + D) * itemsize,
    )

    return pl.pallas_call(
        _make_kernel(P),
        out_shape=jax.ShapeDtypeStruct((M, D), dtype),
        grid=(M // tm,),
        in_specs=[
            pl.BlockSpec((tm, C), lambda i: (i, 0)),
            pl.BlockSpec((3 * C, D), lambda i: (0, 0)),   # resident weights
            pl.BlockSpec((1, D), lambda i: (0, 0)),       # resident bias
        ],
        out_specs=pl.BlockSpec((tm, D), lambda i: (i, 0)),
        compiler_params=pltpu.CompilerParams(
            dimension_semantics=("parallel",)),
        cost_estimate=cost,
    )(base2, w_mat, b_mat)


# ----------------------------------------------------------------------------
# Module: parameter init + forward
# ----------------------------------------------------------------------------
def init_patch_embedding_params(key, d_model, patch_len, dtype=jnp.float32):
    """Conv1d(patch_len->d_model, k=3) params stored directly in matmul layout:
    w_mat[k*C + c, d] == torch_weight[d, c, k].  Init mirrors torch:
    kaiming_normal_(fan_in, relu) weight, default uniform bias."""
    kw, kb = jax.random.split(key)
    fan_in = 3 * patch_len
    std = sqrt(2.0 / fan_in)
    w_mat = (std * jax.random.normal(kw, (3 * patch_len, d_model))).astype(dtype)
    bound = 1.0 / sqrt(fan_in)
    b = jax.random.uniform(kb, (d_model,), dtype, -bound, bound)
    return {"w_mat": w_mat, "b": b}


def conv_params_to_matmul(w_conv, b):
    """Convert torch-layout Conv1d params ([D, C, 3], [D]) to this module's
    matmul layout ([3C, D], [D])."""
    D, C, K = w_conv.shape
    return {"w_mat": jnp.transpose(w_conv, (2, 1, 0)).reshape(K * C, D), "b": b}


def patch_embedding(params, x, patch_len, stride, *, grid_steps_hint=None):
    """x: [B, n_vars, seq_len] -> (emb [B, n_vars*P, d_model], n_vars, P)."""
    B, V, L = x.shape
    w_mat = params["w_mat"]                   # [3C, D]
    b = params["b"]                           # [D]
    C = patch_len
    D = w_mat.shape[1]
    assert w_mat.shape[0] == 3 * C
    dtype = w_mat.dtype                       # module dtype (bf16 halves traffic)

    x = x.astype(dtype)
    N = B * V
    Lp = L + stride

    # ReplicationPad1d((0, stride))
    xp = jnp.concatenate(
        [x, jnp.broadcast_to(x[:, :, -1:], (B, V, stride))], axis=-1
    ).reshape(N, Lp)

    # Compact center-tap feature matrix (pad + unfold + torch raw-view,
    # transposed to row-per-(n,t)); only ~C/stride x the input is materialized.
    idx0, P = _base_view_indices(L, patch_len, stride)      # [P, C], static table
    base2 = xp[:, idx0].reshape(N * P, C)                   # [M, C], rows (n, t)

    out = _conv_matmul(base2, w_mat, b.reshape(1, D), P,
                       grid_steps_hint=grid_steps_hint)     # [M, D]

    # Rows already in (n, t) order -> free row-major reshape to torch's output
    # permute(0,2,1).view(B, V*P, D).  Dropout is identity in eval mode.
    emb = out.reshape(B, V * P, D)
    return emb, V, P


# ----------------------------------------------------------------------------
# Pure-JAX reference (literal emulation of the torch forward, for checking)
# ----------------------------------------------------------------------------
def patch_embedding_ref(params, x, patch_len, stride):
    B, V, L = x.shape
    w_mat = params["w_mat"]                   # [3C, D]
    b = params["b"]                           # [D]
    C = patch_len
    D = w_mat.shape[1]
    w_conv = jnp.transpose(w_mat.reshape(3, C, D), (2, 1, 0))   # [D, C, 3]
    x = x.astype(w_mat.dtype)

    xp = jnp.concatenate(
        [x, jnp.broadcast_to(x[:, :, -1:], (B, V, stride))], axis=-1)
    Lp = L + stride
    P = (Lp - C) // stride + 1

    # unfold
    uidx = jnp.arange(P)[:, None] * stride + jnp.arange(C)[None, :]
    patches = xp[:, :, uidx]                              # [B, V, P, C]
    xv = patches.reshape(B * V, C, P)                     # torch raw .view(-1, C, P)

    # circular Conv1d, kernel 3, pad 1
    xpad = jnp.concatenate([xv[:, :, -1:], xv, xv[:, :, :1]], axis=-1)   # [N, C, P+2]
    taps = jnp.stack([xpad[:, :, k:k + P] for k in range(3)], axis=-1)   # [N, C, P, 3]
    out = jnp.einsum("ncpk,dck->ndp", taps, w_conv) + b[None, :, None]   # [N, D, P]

    out = jnp.transpose(out, (0, 2, 1)).reshape(B, V * P, D)
    return out, V, P


# ----------------------------------------------------------------------------
if __name__ == "__main__":
    # Small shapes consistent with the module's forward pass.
    B, n_vars, seq_len = 2, 4, 16
    d_model = 32
    patch_len = 8
    stride = 4

    key = jax.random.PRNGKey(0)
    kp, kx = jax.random.split(key)

    params = init_patch_embedding_params(kp, d_model, patch_len)
    x = jax.random.normal(kx, (B, n_vars, seq_len), jnp.float32)

    emb, nv, num_patches = patch_embedding(params, x, patch_len, stride)
    emb = jax.block_until_ready(emb)

    ref, nv_ref, np_ref = patch_embedding_ref(params, x, patch_len, stride)

    assert nv == nv_ref == n_vars
    assert num_patches == np_ref
    assert emb.shape == (B, n_vars * num_patches, d_model), emb.shape
    assert jnp.allclose(emb, ref, atol=1e-4, rtol=1e-4), \
        float(jnp.max(jnp.abs(emb - ref)))

    print("KERNEL_OK")
</pallas_src>

<mosaic_0001>
module attributes {stable_mosaic.version = 11 : i64} {
  func.func @kernel(%arg0: i32, %arg1: memref<16x8xf32, #tpu.memory_space<vmem>>, %arg2: memref<24x32xf32, #tpu.memory_space<vmem>>, %arg3: memref<1x32xf32, #tpu.memory_space<vmem>>, %arg4: memref<16x32xf32, #tpu.memory_space<vmem>>) attributes {dimension_semantics = [#tpu.dimension_semantics<parallel>], iteration_bounds = array<i64: 2>, scalar_prefetch = 0 : i64, scratch_operands = 0 : i64, tpu.core_type = #tpu.core_type<tc>, window_params = [{transform_indices = @transform_0, window_bounds = array<i64: 16, 8>}, {pipeline_mode = #tpu.pipeline_mode<synchronous>, transform_indices = @transform_1, window_bounds = array<i64: 24, 32>}, {pipeline_mode = #tpu.pipeline_mode<synchronous>, transform_indices = @transform_2, window_bounds = array<i64: 1, 32>}, {transform_indices = @transform_3, window_bounds = array<i64: 16, 32>}]} {
    %c0 = arith.constant 0 : index
    %c0_0 = arith.constant 0 : index
    %0 = vector.load %arg1[%c0, %c0_0] : memref<16x8xf32, #tpu.memory_space<vmem>>, vector<16x8xf32>
    %1 = vector.extract_strided_slice %0 {offsets = [15, 0], sizes = [1, 8], strides = [1, 1]} : vector<16x8xf32> to vector<1x8xf32>
    %2 = vector.extract_strided_slice %0 {offsets = [0, 0], sizes = [15, 8], strides = [1, 1]} : vector<16x8xf32> to vector<15x8xf32>
    %3 = tpu.concatenate %1, %2 in 0 : vector<1x8xf32>, vector<15x8xf32> -> vector<16x8xf32>
    %4 = vector.extract_strided_slice %0 {offsets = [1, 0], sizes = [15, 8], strides = [1, 1]} : vector<16x8xf32> to vector<15x8xf32>
    %5 = vector.extract_strided_slice %0 {offsets = [0, 0], sizes = [1, 8], strides = [1, 1]} : vector<16x8xf32> to vector<1x8xf32>
    %6 = tpu.concatenate %4, %5 in 0 : vector<15x8xf32>, vector<1x8xf32> -> vector<16x8xf32>
    %7 = vector.extract_strided_slice %0 {offsets = [3, 0], sizes = [13, 8], strides = [1, 1]} : vector<16x8xf32> to vector<13x8xf32>
    %8 = vector.extract_strided_slice %0 {offsets = [0, 0], sizes = [3, 8], strides = [1, 1]} : vector<16x8xf32> to vector<3x8xf32>
    %9 = tpu.concatenate %7, %8 in 0 : vector<13x8xf32>, vector<3x8xf32> -> vector<16x8xf32>
    %10 = vector.extract_strided_slice %0 {offsets = [13, 0], sizes = [3, 8], strides = [1, 1]} : vector<16x8xf32> to vector<3x8xf32>
    %11 = vector.extract_strided_slice %0 {offsets = [0, 0], sizes = [13, 8], strides = [1, 1]} : vector<16x8xf32> to vector<13x8xf32>
    %12 = tpu.concatenate %10, %11 in 0 : vector<3x8xf32>, vector<13x8xf32> -> vector<16x8xf32>
    %13 = tpu.iota {dimensions = array<i32: 0>} : vector<16x8xi32>
    %c4_i32 = arith.constant 4 : i32
    %c0_i32 = arith.constant 0 : i32
    %14 = arith.cmpi eq, %c4_i32, %c0_i32 : i32
    %c1_i32 = arith.constant 1 : i32
    %15 = arith.select %14, %c1_i32, %c4_i32 : i32
    %16 = vector.broadcast %15 : i32 to vector<16x8xi32>
    %17 = arith.remsi %13, %16 : vector<16x8xi32>
    %c0_i32_1 = arith.constant 0 : i32
    %18 = vector.broadcast %c0_i32_1 : i32 to vector<16x8xi32>
    %19 = arith.cmpi ne, %17, %18 : vector<16x8xi32>
    %c0_i32_2 = arith.constant 0 : i32
    %20 = vector.broadcast %c0_i32_2 : i32 to vector<16x8xi32>
    %21 = arith.cmpi slt, %17, %20 : vector<16x8xi32>
    %c0_i32_3 = arith.constant 0 : i32
    %22 = arith.cmpi slt, %15, %c0_i32_3 : i32
    %23 = vector.broadcast %22 : i1 to vector<16x8xi1>
    %24 = vector.broadcast %23 : vector<16x8xi1> to vector<16x8xi1>
    %25 = arith.xori %21, %24 : vector<16x8xi1>
    %26 = arith.andi %25, %19 : vector<16x8xi1>
    %27 = vector.broadcast %15 : i32 to vector<16x8xi32>
    %28 = arith.addi %17, %27 : vector<16x8xi32>
    %29 = arith.select %26, %28, %17 : vector<16x8xi1>, vector<16x8xi32>
    %c0_i32_4 = arith.constant 0 : i32
    %30 = vector.broadcast %c0_i32_4 : i32 to vector<16x8xi32>
    %31 = arith.cmpi eq, %29, %30 : vector<16x8xi32>
    %32 = arith.select %31, %9, %3 : vector<16x8xi1>, vector<16x8xf32>
    %c3_i32 = arith.constant 3 : i32
    %33 = vector.broadcast %c3_i32 : i32 to vector<16x8xi32>
    %34 = arith.cmpi eq, %29, %33 : vector<16x8xi32>
    %35 = arith.select %34, %12, %6 : vector<16x8xi1>, vector<16x8xf32>
    %36 = tpu.concatenate %32, %0, %35 in 1 : vector<16x8xf32>, vector<16x8xf32>, vector<16x8xf32> -> vector<16x24xf32>
    %c0_5 = arith.constant 0 : index
    %c0_6 = arith.constant 0 : index
    %37 = vector.load %arg2[%c0_5, %c0_6] : memref<24x32xf32, #tpu.memory_space<vmem>>, vector<24x32xf32>
    %cst = arith.constant dense<0.000000e+00> : vector<16x32xf32>
    %38 = tpu.matmul %36, %37, %cst {dimension_numbers = #tpu.dot_dimension_numbers<[1], [0], [0], [1], [0, 0, 1, 1], [], []>} : vector<16x24xf32>, vector<24x32xf32>, vector<16x32xf32> -> vector<16x32xf32>
    %c0_7 = arith.constant 0 : index
    %c0_8 = arith.constant 0 : index
    %39 = vector.load %arg3[%c0_7, %c0_8] : memref<1x32xf32, #tpu.memory_space<vmem>>, vector<1x32xf32>
    %40 = vector.broadcast %39 : vector<1x32xf32> to vector<16x32xf32>
    %41 = arith.addf %38, %40 : vector<16x32xf32>
    %c0_9 = arith.constant 0 : index
    %c0_10 = arith.constant 0 : index
    %42 = vector.load %arg4[%c0_9, %c0_10] : memref<16x32xf32, #tpu.memory_space<vmem>>, vector<16x32xf32>
    tpu.vector_store %arg4[%c0_9, %c0_10], %41 {strides = array<i32>} : memref<16x32xf32, #tpu.memory_space<vmem>>, vector<16x32xf32>,
    return
  }
  func.func @transform_0(%arg0: i32) -> (i32, i32) {
    %c0_i32 = arith.constant 0 : i32
    %c0_i32_0 = arith.constant 0 : i32
    return %arg0, %c0_i32 : i32, i32
  }
  func.func @transform_1(%arg0: i32) -> (i32, i32) {
    %c0_i32 = arith.constant 0 : i32
    %c0_i32_0 = arith.constant 0 : i32
    %c0_i32_1 = arith.constant 0 : i32
    return %c0_i32, %c0_i32_0 : i32, i32
  }
  func.func @transform_2(%arg0: i32) -> (i32, i32) {
    %c0_i32 = arith.constant 0 : i32
    %c0_i32_0 = arith.constant 0 : i32
    %c0_i32_1 = arith.constant 0 : i32
    return %c0_i32, %c0_i32_0 : i32, i32
  }
  func.func @transform_3(%arg0: i32) -> (i32, i32) {
    %c0_i32 = arith.constant 0 : i32
    %c0_i32_0 = arith.constant 0 : i32
    return %arg0, %c0_i32 : i32, i32
  }
}

</mosaic_0001>

<llo_original>
// kernel: tpu_custom_call.1
$region0: #{tpu_custom_call.1}
  #allocation0 [shape = 'u32[]', space=smem, size = 0x4, offset = 0x4, fixed_abs, tag = 'smem constant byte address 0x4 - core index']
  #allocation1 [shape = 'u32[144,128]{1,0:T(1,128)}', space=vmem, size = 0x12000, scoped, tag = 'internal scratch']
  %s0 = inlined_call_operand.vmem [shape: f32[32,8], index: 0, kind: input, shape index: {}]
  %s1 = inlined_call_operand.vmem [shape: f32[24,32], index: 1, kind: input, shape index: {}]
  %s2 = inlined_call_operand.vmem [shape: f32[1,32], index: 2, kind: input, shape index: {}]
  %s3 = inlined_call_operand.hbm [shape: f32[32,32], index: 3, kind: output, shape index: {}]
  %s4 = sld [smem:[#allocation0]]
  $region45: #{tpu_custom_call.1} parent=0
    _
  %s6 = ssub.s32 1, %s4
  %s7 = scalar_select 0, %s6, %s4
  $region1: #{tpu_custom_call.1} parent=0
    #allocation2 [shape = 'u8[16384]{0}', space=vmem, size = 0x4000, scoped, tag = 'output window, operand 0']
    #allocation3 [shape = 's32[2]{0}', space=sflag, size = 0x8, scoped, tag = 'scoped memory for tpu_custom_call.1']
    %8 = vsyncpa [#allocation3], 0
    %s9 = scalar_lea.sflag [#allocation3], 1
    %10 = vsyncpa %s9, 0
    loop: start=0, step=1, limit=4
    $region2: #{tpu_custom_call.1} parent=1 // loop_pre_header
      _
    $region3: #{tpu_custom_call.1} parent=1 // loop_header
      %s12 = sphi 0, %s16
      %p13 = scmp.ge.s32.totalorder %s12, 4
      %s22 = sphi 0, %s24
      %s25 = sphi 0, %s22
      %s26 = sphi 0, %s25
      %s42 = sphi 0, %s26
      %s46 = sphi 0, %s46
      %s48 = sphi 0, %s46
      %s49 = sphi 0, %s48
      %s63 = sphi 0, %s49
      %s67 = sphi 0, %s67
      %s69 = sphi 0, %s67
      %s70 = sphi 0, %s69
      %s84 = sphi 0, %s70
      %s90 = sphi 0, %s92
      %s93 = sphi 0, %s90
      %s94 = sphi 0, %s93
      %s110 = sphi 0, %s94
    $region4: #{tpu_custom_call.1} parent=1 // loop_header_branch
      %15 = sbr.rel (%p13) target = $region8
    $region5: #{tpu_custom_call.1} parent=1 // loop_body
      %s17 = ssub.s32 %s12, 1
      %s18 = ssub.s32 %s12, 2
      %s19 = sadd.s32 %s12, 1
      %s20 = ssub.s32 %s12, %s19
      %p21 = scmp.eq.s32.totalorder %s20, 0
      %s23 = sadd.s32 %s22, 1
      %s24 = scalar_select %p21, %s22, %s23
      %p27 = pneg %p21
      %p28 = scmp.eq.s32.totalorder %s12, 1
      %p29 = por %p27, %p28
      %p30 = scmp.ne.s32.totalorder %s22, %s25
      %p31 = scmp.eq.s32.totalorder %s12, 0
      %p32 = por %p30, %p31
      %p33 = scmp.ne.s32.totalorder %s22, %s25
      %p34 = scmp.eq.s32.totalorder %s17, 1
      %p35 = por %p33, %p34
      %p36 = scmp.ne.s32.totalorder %s25, %s26
      %p37 = scmp.eq.s32.totalorder %s17, 0
      %p38 = por %p36, %p37
      %p39 = scmp.ne.s32.totalorder %s25, %s26
      %p40 = scmp.eq.s32.totalorder %s18, 1
      %p41 = por %p39, %p40
      %p43 = scmp.ne.s32.totalorder %s26, %s42
      %p44 = scmp.eq.s32.totalorder %s18, 0
      %p45 = por %p43, %p44
      %s47 = sadd.s32 %s46, 1
      %p50 = scmp.eq.s32.totalorder %s12, 1
      %p51 = scmp.ne.s32.totalorder %s46, %s48
      %p52 = scmp.eq.s32.totalorder %s12, 0
      %p53 = por %p51, %p52
      %p54 = scmp.ne.s32.totalorder %s46, %s48
      %p55 = scmp.eq.s32.totalorder %s17, 1
      %p56 = por %p54, %p55
      %p57 = scmp.ne.s32.totalorder %s48, %s49
      %p58 = scmp.eq.s32.totalorder %s17, 0
      %p59 = por %p57, %p58
      %p60 = scmp.ne.s32.totalorder %s48, %s49
      %p61 = scmp.eq.s32.totalorder %s18, 1
      %p62 = por %p60, %p61
      %p64 = scmp.ne.s32.totalorder %s49, %s63
      %p65 = scmp.eq.s32.totalorder %s18, 0
      %p66 = por %p64, %p65
      %s68 = sadd.s32 %s67, 1
      %p71 = scmp.eq.s32.totalorder %s12, 1
      %p72 = scmp.ne.s32.totalorder %s67, %s69
      %p73 = scmp.eq.s32.totalorder %s12, 0
      %p74 = por %p72, %p73
      %p75 = scmp.ne.s32.totalorder %s67, %s69
      %p76 = scmp.eq.s32.totalorder %s17, 1
      %p77 = por %p75, %p76
      %p78 = scmp.ne.s32.totalorder %s69, %s70
      %p79 = scmp.eq.s32.totalorder %s17, 0
      %p80 = por %p78, %p79
      %p81 = scmp.ne.s32.totalorder %s69, %s70
      %p82 = scmp.eq.s32.totalorder %s18, 1
      %p83 = por %p81, %p82
      %p85 = scmp.ne.s32.totalorder %s70, %s84
      %p86 = scmp.eq.s32.totalorder %s18, 0
      %p87 = por %p85, %p86
      %s88 = ssub.s32 %s12, %s19
      %p89 = scmp.eq.s32.totalorder %s88, 0
      %s91 = sadd.s32 %s90, 1
      %s92 = scalar_select %p89, %s90, %s91
      %p95 = pneg %p89
      %p96 = scmp.eq.s32.totalorder %s12, 1
      %p97 = por %p95, %p96
      %p98 = scmp.ne.s32.totalorder %s90, %s93
      %p99 = scmp.eq.s32.totalorder %s12, 0
      %p100 = por %p98, %p99
      %p101 = scmp.ne.s32.totalorder %s90, %s93
      %p102 = scmp.eq.s32.totalorder %s17, 1
      %p103 = por %p101, %p102
      %p104 = scmp.ne.s32.totalorder %s93, %s94
      %p105 = scmp.eq.s32.totalorder %s17, 0
      %p106 = por %p104, %p105
      %p107 = scmp.ne.s32.totalorder %s93, %s94
      %p108 = scmp.eq.s32.totalorder %s18, 1
      %p109 = por %p107, %p108
      %p111 = scmp.ne.s32.totalorder %s94, %s110
      %p112 = scmp.eq.s32.totalorder %s18, 0
      %p113 = por %p111, %p112
      %p114 = scmp.le.s32.totalorder 1, %s12
      %p115 = scmp.lt.s32.totalorder %s12, 3
      %p116 = pnand %p114, %p115
      %p117 = pneg %p116
      // Predicated region
      $region9: #{tpu_custom_call.1} parent=5 // pred_check
        _
      $region10: #{tpu_custom_call.1} parent=5 // pred_check_branch
        %119 = sbr.rel (%p116) target = $region12
      $region11: #{tpu_custom_call.1} parent=5 // pred_region
        %s120 = ssub.s32 %s12, 1
        // Predicated region
        $region13: #{tpu_custom_call.1} parent=11 // pred_check
          %p121 = pneg %p59
        $region14: #{tpu_custom_call.1} parent=11 // pred_check_branch
          %123 = sbr.rel (%p121) target = $region16
        $region15: #{tpu_custom_call.1} parent=11 // pred_region
          _
        $region16: #{tpu_custom_call.1} parent=11 // pred_fallthru
          _
        // Predicated region
        $region17: #{tpu_custom_call.1} parent=11 // pred_check
          %p124 = pneg %p80
        $region18: #{tpu_custom_call.1} parent=11 // pred_check_branch
          %126 = sbr.rel (%p124) target = $region20
        $region19: #{tpu_custom_call.1} parent=11 // pred_region
          _
        $region20: #{tpu_custom_call.1} parent=11 // pred_fallthru
          _
      $region12: #{tpu_custom_call.1} parent=5 // pred_fallthru
        _
      %p127 = scmp.lt.s32.totalorder %s12, 2
      // Predicated region
      $region21: #{tpu_custom_call.1} parent=5 // pred_check
        %p128 = pneg %p127
      $region22: #{tpu_custom_call.1} parent=5 // pred_check_branch
        %130 = sbr.rel (%p128) target = $region24
      $region23: #{tpu_custom_call.1} parent=5 // pred_region
        // Predicated region
        $region25: #{tpu_custom_call.1} parent=23 // pred_check
          %p131 = pneg %p32
        $region26: #{tpu_custom_call.1} parent=23 // pred_check_branch
          %133 = sbr.rel (%p131) target = $region28
        $region27: #{tpu_custom_call.1} parent=23 // pred_region
          %s134 = smul.u32 2, %s12
          %p135 = scmp.lt.s32.totalorder %s134, 3
          %s136 = scalar_select %p135, %s134, 3
          %s137 = smul.addr %s136, 8
          %s138 = scalar_lea.vmem %s0, %s137
          %s139 = smul.u32 2, %s12
        $region28: #{tpu_custom_call.1} parent=23 // pred_fallthru
          _
      $region24: #{tpu_custom_call.1} parent=5 // pred_fallthru
        _
      %p140 = scmp.le.s32.totalorder 1, %s12
      %p141 = scmp.lt.s32.totalorder %s12, 3
      %p142 = pnand %p140, %p141
      %p143 = pneg %p142
      // Predicated region
      $region29: #{tpu_custom_call.1} parent=5 // pred_check
        _
      $region30: #{tpu_custom_call.1} parent=5 // pred_check_branch
        %145 = sbr.rel (%p142) target = $region32
      $region31: #{tpu_custom_call.1} parent=5 // pred_region
        %s146 = ssub.s32 %s12, 1
        %s147 = smul.u32 2, %s17
        %p148 = scmp.lt.s32.totalorder %s147, 3
        %s149 = scalar_select %p148, %s147, 3
        %s150 = smul.addr %s149, 8
        %s151 = scalar_lea.vmem %s0, %s150
        %p152 = pneg %p38
        %p153 = pneg %p35
        %p154 = pneg %p59
        %p155 = pneg %p56
        %p156 = pneg %p80
        %p157 = pneg %p77
        %p158 = pneg %p106
        %p159 = pneg %p103
        %s160 = sand.u32 %s93, 1
        %s161 = scalar_lea.sflag [#allocation3], %s160
        %s162 = sand.u32 %s93, 1
        %s163 = smul.addr %s162, 16
        %s164 = scalar_lea.vmem [#allocation2], %s163
        %s165 = smul.u32 2, %s17
        %p166 = scmp.lt.s32.totalorder %s165, 3
        %s167 = scalar_select %p166, %s165, 3
        %s168 = smul.addr %s167, 8
        %s169 = scalar_lea.vmem %s0, %s168
        %s170 = smul.u32 2, %s17
        %s171 = smul.u32 2, %s17
        %v172 = vld [vmem:[%s169] sm:$0xff]
        %v173 = vld [vmem:[%s169 + $0x8] sm:$0xff]
        %v175 = vrot.slane %v173, 7
        %vm178 = vcmask 1040384
        %v179 = vrot.slane %v172, 7
        %v180 = vsel %vm178, %v179, %v175
        %v183 = vsel %vm178, %v175, %v179
        %vm184 = vcmask 1046528
        %v185 = vrot.slane %v172, 1
        %v186 = vrot.slane %v173, 1
        %v187 = vsel %vm184, %v185, %v186
        %v191 = vsel %vm184, %v186, %v185
        %vm192 = vcmask 1044480
        %v193 = vrot.slane %v172, 3
        %v194 = vrot.slane %v173, 3
        %v195 = vsel %vm192, %v193, %v194
        %v199 = vsel %vm192, %v194, %v193
        %v200 = vrot.slane %v173, 5
        %vm202 = vcmask 1042432
        %v203 = vrot.slane %v172, 5
        %v204 = vsel %vm202, %v203, %v200
        %v207 = vsel %vm202, %v200, %v203
        %v208 = vlaneseq
        %v209 = vshrl.u32 %v208, 7
        %v210 = vadd.s32 %v209, 8
        %vm211 = vcmp.lt.s32.totalorder %v209, 0
        %v212 = vsub.s32 0, %v209
        %v213 = vsel %vm211, %v212, %v209
        %v214 = vshrl.u32 %v213, 2
        %v215 = vand.u32 %v213, 3
        %v216 = vsub.s32 0, %v215
        %v217 = vsel %vm211, %v216, %v215
        %vm218 = vcmp.lt.s32.totalorder %v210, 0
        %v219 = vsub.s32 0, %v210
        %v220 = vsel %vm218, %v219, %v210
        %v221 = vshrl.u32 %v220, 2
        %v222 = vand.u32 %v220, 3
        %v223 = vsub.s32 0, %v222
        %v224 = vsel %vm218, %v223, %v222
        %vm225 = vcmp.ne.s32.totalorder %v217, 0
        %vm226 = vcmp.ne.s32.totalorder %v224, 0
        %vm227 = vcmp.lt.s32.totalorder %v217, 0
        %vm228 = vcmp.lt.s32.totalorder %v224, 0
        %vm229 = vmand %vm227, %vm225
        %vm230 = vmand %vm228, %vm226
        %v231 = vadd.s32 %v217, 4
        %v232 = vadd.s32 %v224, 4
        %v233 = vsel %vm229, %v231, %v217
        %v234 = vsel %vm230, %v232, %v224
        %vm235 = vcmp.eq.s32.totalorder %v233, 0
        %vm236 = vcmp.eq.s32.totalorder %v234, 0
        %v237 = vsel %vm235, %v195, %v183
        %v238 = vsel %vm236, %v199, %v180
        %vm239 = vcmp.eq.s32.totalorder %v233, 3
        %vm240 = vcmp.eq.s32.totalorder %v234, 3
        %v241 = vsel %vm239, %v207, %v187
        %v242 = vsel %vm240, %v204, %v191
        %243 = vrot.lane.b32.xlu0 %v172, 8
        %v244 = vpop.permute.xlu0 %243
        %245 = vrot.lane.b32.xlu0 %v173, 8
        %v246 = vpop.permute.xlu0 %245
        %251 = vrot.lane.b32.xlu0 %v241, 16
        %v252 = vpop.permute.xlu0 %251
        %253 = vrot.lane.b32.xlu0 %v242, 16
        %v254 = vpop.permute.xlu0 %253
        %vm257 = vcmask 64512
        %v258 = vsel %vm257, %v237, %v244
        %v259 = vsel %vm257, %v238, %v246
        %vm260 = vcmask 130048
        %v261 = vsel %vm260, %v258, %v252
        %v262 = vsel %vm260, %v259, %v254
        %v263 = vld [vmem:[%s1] sm:$0xff]
        %v264 = vld [vmem:[%s1 + $0x8] sm:$0xff]
        %v265 = vld [vmem:[%s1 + $0x10] sm:$0xff]
        %v266 = vld [vmem:[%s2] sm:$0x1]
        %v268 = vlaneseq
        %v269 = vshrl.u32 %v268, 7
        %v270 = vsub.s32 0, %v269
        %v271 = vrot.slane %v266, %v270
        %vm273 = vcmask 195584
        %v275 = vsel %vm273, %v261, 0
        %v278 = vsel %vm273, %v262, 0
        %280 = vmatprep.subr.mxu0 0.0
        %281 = vmatpush1.msra.mxu0 %v263
        %282 = vmatprep.subr.mxu0 0.0
        %283 = vmatpush1.msra.mxu0 %v264
        %284 = vmatprep.subr.mxu0 0.0
        %285 = vmatpush1.msra.mxu0 %v265
        %286 = vmatprep.subr.mxu0 0.0
        %287 = vmatpush1.msra.mxu0 0.0
        %288 = vmatprep.subr.mxu0 0.0
        %289 = vmatpush1.msra.mxu0 0.0
        %290 = vmatprep.subr.mxu0 0.0
        %291 = vmatpush1.msra.mxu0 0.0
        %292 = vmatprep.subr.mxu0 0.0
        %293 = vmatpush1.msra.mxu0 0.0
        %294 = vmatprep.subr.mxu0 0.0
        %295 = vmatpush1.msra.mxu0 0.0
        %296 = vmatprep.subr.mxu0 0.0
        %297 = vmatpush1.msra.mxu0 0.0
        %298 = vmatprep.subr.mxu0 0.0
        %299 = vmatpush1.msra.mxu0 0.0
        %300 = vmatprep.subr.mxu0 0.0
        %301 = vmatpush1.msra.mxu0 0.0
        %302 = vmatprep.subr.mxu0 0.0
        %303 = vmatpush1.msra.mxu0 0.0
        %304 = vmatprep.subr.mxu0 0.0
        %305 = vmatpush1.msra.mxu0 0.0
        %306 = vmatprep.subr.mxu0 0.0
        %307 = vmatpush1.msra.mxu0 0.0
        %308 = vmatprep.subr.mxu0 0.0
        %309 = vmatpush1.msra.mxu0 0.0
        %310 = vmatprep.subr.mxu0 0.0
        %311 = vmatpush1.msra.mxu0 0.0
        %312 = vmatprep.subr.mxu0 0.0
        %313 = vmatpush1.msra.mxu0 0.0
        %314 = vmatprep.subr.mxu0 0.0
        %315 = vmatpush1.msra.mxu0 0.0
        %316 = vmatprep.subr.mxu0 0.0
        %317 = vmatpush1.msra.mxu0 0.0
        %318 = vmatprep.subr.mxu0 0.0
        %319 = vmatpush1.msra.mxu0 0.0
        %320 = vmatprep.subr.mxu0 0.0
        %321 = vmatpush1.msra.mxu0 0.0
        %322 = vmatprep.subr.mxu0 0.0
        %323 = vmatpush1.msra.mxu0 0.0
        %324 = vmatprep.subr.mxu0 0.0
        %325 = vmatpush1.msra.mxu0 0.0
        %326 = vmatprep.subr.mxu0 0.0
        %327 = vmatpush1.msra.mxu0 0.0
        %328 = vmatprep.subr.mxu0 0.0
        %329 = vmatpush1.msra.mxu0 0.0
        %330 = vmatprep.subr.mxu0 0.0
        %331 = vmatpush1.msra.mxu0 0.0
        %332 = vmatprep.subr.mxu0 0.0
        %333 = vmatpush1.msra.mxu0 0.0
        %334 = vmatprep.subr.mxu0 0.0
        %335 = vmatpush1.msra.mxu0 0.0
        %336 = vmatprep.subr.mxu0 0.0
        %337 = vmatpush1.msra.mxu0 0.0
        %338 = vmatprep.subr.mxu0 0.0
        %339 = vmatpush1.msra.mxu0 0.0
        %340 = vmatprep.subr.mxu0 0.0
        %341 = vmatpush1.msra.mxu0 0.0
        %342 = vmatprep.subr.mxu0 0.0
        %343 = vmatpush1.msra.mxu0 0.0
        %344 = vmatprep.mubr.f32.mxu0 0.0
        %345 = vmatmul.mubr.f32.gmra.mrb[0].mxu0 %v275
        %v346 = vpop.f32.mrb[0].mxu0
        %v347 = vadd.f32 %v271, %v346
        %v348 = vpop.f32.mrb[0].mxu0
        %349 = vmatprep.mubr.f32.mxu0 0.0
        %350 = vmatmul.mubr.f32.gmra.mrb[0].mxu0 %v278
        %v351 = vpop.f32.mrb[0].mxu0
        %v352 = vadd.f32 %v271, %v351
        %v353 = vpop.f32.mrb[0].mxu0
        %354 = vdwg.mxu0
        %vm355 = vcmask 261120
        %356 = vst.msk [vmem:[%s164] sm:$0xff] %vm355, %v347
        %357 = vst.msk [vmem:[%s164 + $0x8] sm:$0xff] %vm355, %v352
        %s358 = sand.u32 %s93, 1
        %s359 = scalar_lea.sflag [#allocation3], %s358
        %s360 = sand.u32 %s93, 1
        %s361 = smul.addr %s360, 16
        %s362 = scalar_lea.vmem [#allocation2], %s361
        // Predicated region
        $region33: #{tpu_custom_call.1} parent=31 // pred_check
          %p363 = pneg %p103
        $region34: #{tpu_custom_call.1} parent=31 // pred_check_branch
          %365 = sbr.rel (%p363) target = $region36
        $region35: #{tpu_custom_call.1} parent=31 // pred_region
          %s366 = smul.u32 2, %s17
          %s368 = ssub.s32 256, 256
          %369 = vsyncadd %s359, %s368
          %s370 = smul.addr %s366, 128
          %s371 = scalar_lea.hbm %s3, %s370
          %s372 = sshll.u32 %s362, 4
          %s373 = int_to_ptr.vmem [resolvable:$true] %s372
          %378 = dma.vmem_to_hbm [thread:$0]  %s373, 256, %s371, %s359, 128, 128, 8
        $region36: #{tpu_custom_call.1} parent=31 // pred_fallthru
          _
      $region32: #{tpu_custom_call.1} parent=5 // pred_fallthru
        _
      %p379 = scmp.le.s32.totalorder 2, %s12
      // Predicated region
      $region37: #{tpu_custom_call.1} parent=5 // pred_check
        %p380 = pneg %p379
      $region38: #{tpu_custom_call.1} parent=5 // pred_check_branch
        %382 = sbr.rel (%p380) target = $region40
      $region39: #{tpu_custom_call.1} parent=5 // pred_region
        %s383 = ssub.s32 %s12, 2
        // Predicated region
        $region41: #{tpu_custom_call.1} parent=39 // pred_check
          %p384 = pneg %p109
        $region42: #{tpu_custom_call.1} parent=39 // pred_check_branch
          %386 = sbr.rel (%p384) target = $region44
        $region43: #{tpu_custom_call.1} parent=39 // pred_region
          %s387 = sand.u32 %s94, 1
          %s388 = scalar_lea.sflag [#allocation3], %s387
          %s389 = sand.u32 %s94, 1
          %s390 = smul.addr %s389, 16
          %s391 = scalar_lea.vmem [#allocation2], %s390
          %392 = dma.done %s388, 256
        $region44: #{tpu_custom_call.1} parent=39 // pred_fallthru
          _
      $region40: #{tpu_custom_call.1} parent=5 // pred_fallthru
        _
    $region6: #{tpu_custom_call.1} parent=1 // loop_footer
      %s16 = sadd.s32 1, %s12
    $region7: #{tpu_custom_call.1} parent=1 // loop_footer_branch
      %11 = sbr.rel target = $region3
    $region8: #{tpu_custom_call.1} parent=1 // loop_exit
      _
    %393 = vsyncpa [#allocation3], 1
    %s394 = scalar_lea.sflag [#allocation3], 1
    %395 = vsyncpa %s394, 1

</llo_original>
